<compile_context>
chip_gen: v7x
topology: tpu7x:2x2x1
jax: 0.10.0
libtpu: 0.0.40
codegen_flags: <defaults>
</compile_context>

<pallas_src>
import functools
import math

import numpy as np

import jax
import jax.numpy as jnp
from jax import lax
from jax.experimental import pallas as pl
from jax.experimental.pallas import tpu as pltpu


def _round_up(x, m):
    return ((x + m - 1) // m) * m


def _cdiv(a, b):
    return -(-a // b)


# ----------------------------------------------------------------------------
# Host-side structure detection (all module weights are fixed / concrete).
# ----------------------------------------------------------------------------

def _concrete(arr):
    try:
        return np.asarray(jax.device_get(arr))
    except Exception:            # traced value -> use the general path
        return None


def _diagonal_of(input_weight):
    """Return diag(inputWeight) (jnp, f32) if it is exactly diagonal, else None."""
    iw = _concrete(input_weight)
    if iw is None or iw.ndim != 2 or iw.shape[0] != iw.shape[1]:
        return None
    if np.array_equal(iw, np.diag(np.diag(iw))):
        return jnp.asarray(np.diag(iw).astype(np.float32))
    return None


def _detect_4neighbour_grid(hidden_weight):
    """Return image side S if hiddenWeight is the 0/1 4-neighbour adjacency of an SxS grid."""
    hw = _concrete(hidden_weight)
    if hw is None or hw.ndim != 2 or hw.shape[0] != hw.shape[1]:
        return None
    Hn = hw.shape[0]
    S = int(round(math.sqrt(Hn)))
    if S < 2 or S * S != Hn:
        return None
    idx = np.arange(Hn)
    r, c = idx // S, idx % S
    adj = (np.abs(r[:, None] - r[None, :]) + np.abs(c[:, None] - c[None, :])) == 1
    ok = np.array_equal(hw != 0, adj) and np.all((hw == 0) | (hw == 1))
    return S if ok else None


_ROLL_SIGN = {}


def _pltpu_roll_sign():
    """+1 if pltpu.roll matches jnp.roll (shift moves data toward higher lane index),
    -1 if reversed, None if the probe cannot run (stencil path disabled)."""
    if "s" in _ROLL_SIGN:
        return _ROLL_SIGN["s"]
    sign = None
    try:
        def probe(x_ref, o_ref):
            o_ref[...] = pltpu.roll(x_ref[...], 1, 1)
        x = lax.broadcasted_iota(jnp.float32, (8, 128), 1)
        out = pl.pallas_call(
            probe, out_shape=jax.ShapeDtypeStruct((8, 128), jnp.float32))(x)
        v = int(jax.device_get(out[0, 1]))
        if v == 0:
            sign = 1
        elif v == 2:
            sign = -1
    except Exception:
        sign = None
    _ROLL_SIGN["s"] = sign
    return sign


def _chip_vmem_bytes():
    try:
        cap = int(pltpu.get_tpu_info().vmem_capacity_bytes)
        if cap > 0:
            return cap
    except Exception:
        pass
    return 64 << 20          # conservative default: v7x per-TensorCore VMEM


# ----------------------------------------------------------------------------
# Kernels
# ----------------------------------------------------------------------------

def _dense_kernel(u0_ref, x_ref, wwT_ref, bias_ref, a_ref, out_ref, *,
                  layers, scalar, chunks, rows, unroll, matmul_dtype):
    """General-mask path: u_{t+1} = tanh(c + u_t @ (s*WwT)), c iteration-invariant."""
    wwT = wwT_ref[...]                       # (Hp, Hp), f32 or bf16, pre-scaled by s
    bias = bias_ref[...]                     # (1, Hp) = s * bias
    a_row = a_ref[...]                       # (1, Hp) = s * diag(a * inputWeight)
    cs, us = [], []
    for k in range(chunks):
        sl = pl.ds(k * rows, rows)
        u0 = u0_ref[sl, :]
        x = x_ref[sl, :]
        u_fix = jnp.where(u0 == -1.0, 0.0, u0)
        cs.append(u_fix * scalar + bias + x * a_row)      # f32, computed once
        us.append(u0)

    def body(_, carry):
        # chunks > 1 gives two independent matmul->tanh chains so the scheduler
        # can overlap the MXU of one chunk with the EUP tanh of the other.
        return tuple(
            jnp.tanh(c + jnp.dot(u.astype(matmul_dtype), wwT,
                                 preferred_element_type=jnp.float32))
            for c, u in zip(cs, carry))

    out = lax.fori_loop(0, layers, body, tuple(us), unroll=unroll)
    for k in range(chunks):
        out_ref[pl.ds(k * rows, rows), :] = out[k].astype(out_ref.dtype)


def _stencil_kernel(u0_ref, x_ref, sw_ref, bias_ref, a_ref, out_ref, *,
                    layers, scalar, shifts, unroll):
    """4-neighbour grid path: (w*hiddenWeight)@u == w * (4 masked lane rolls of u)."""
    sw = sw_ref[...]                          # (8, Hp): rows 0..3 = s*w*mask, 4..7 zero
    w_nb = [sw[k:k + 1, :] for k in range(4)]
    bias = bias_ref[...]
    a_row = a_ref[...]
    u0 = u0_ref[...]
    x = x_ref[...]
    u_fix = jnp.where(u0 == -1.0, 0.0, u0)
    c = u_fix * scalar + bias + x * a_row     # iteration-invariant, f32

    def body(_, u):
        neigh = (w_nb[0] * pltpu.roll(u, shifts[0], 1)
                 + w_nb[1] * pltpu.roll(u, shifts[1], 1)
                 + w_nb[2] * pltpu.roll(u, shifts[2], 1)
                 + w_nb[3] * pltpu.roll(u, shifts[3], 1))
        return jnp.tanh(c + neigh)

    u = lax.fori_loop(0, layers, body, u0, unroll=unroll)
    out_ref[...] = u.astype(out_ref.dtype)


# ----------------------------------------------------------------------------
# Wrapper
# ----------------------------------------------------------------------------

def range_propagation_fixed_weights(initial_hidden, x, w, a, bias, scalar,
                                    hidden_weight, input_weight, layers, *,
                                    batch_tile=256, matmul_dtype=jnp.float32,
                                    use_stencil="auto"):
    """Pallas forward of RangePropgation_FixedWeights.

    initial_hidden, x : (B, H) f32.   w, a, bias : (H, 1).   scalar : (1,).
    hidden_weight : (H, H) 0/1 mask.  input_weight : (H, H) 0/1 mask (diagonal
    as built in __init__).  All parameters are fixed, so scalar folding and
    structure detection happen on the host.
    """
    B, H = initial_hidden.shape
    f32 = jnp.float32
    layers = int(layers)

    # Fixed module parameter -> bake as a Python float (drops the SMEM operand).
    s = float(np.asarray(jax.device_get(scalar)).reshape(()))

    # (a * inputWeight) @ x : diagonal inputWeight reduces to an elementwise
    # multiply (done in-kernel, fused); general masks fall back to one host matmul.
    a_diag = _diagonal_of(input_weight)
    if a_diag is not None:
        x_eff = x.astype(f32)
        a_row = (s * (a.astype(f32).reshape(H) * a_diag)).reshape(1, H)
    else:
        x_eff = jnp.matmul(x.astype(f32),
                           (a.astype(f32) * input_weight.astype(f32)).T,
                           precision=lax.Precision.HIGHEST)
        a_row = jnp.full((1, H), s, f32)

    bias_s = s * bias.astype(f32).reshape(1, H)

    # Stencil path only when hiddenWeight really is the 4-neighbour grid adjacency
    # and the hardware roll direction probe succeeds.
    img_s = None
    roll_sign = None
    if use_stencil in ("auto", True):
        img_s = _detect_4neighbour_grid(hidden_weight)
        if img_s is not None:
            roll_sign = _pltpu_roll_sign()
            if roll_sign is None:
                img_s = None
    use_sten = img_s is not None

    # ---- tiling: lane dim %128, divisor-aware batch tiles, chip-aware VMEM ----
    Hp = _round_up(H, 128)
    w_itemsize = 4 if use_sten else jnp.dtype(matmul_dtype).itemsize
    weight_buf_bytes = (8 * Hp * 4) if use_sten else (Hp * Hp * w_itemsize)

    cap = _chip_vmem_bytes()
    budget = int(cap * 0.9)

    def vmem_estimate(tb):
        tile = 4 * tb * Hp
        # Conservative: assume the pipeliner double-buffers every operand.
        return (2 * weight_buf_bytes + 4 * (2 * Hp * 4)
                + 2 * 2 * tile        # u0, x tiles (double-buffered)
                + 2 * tile            # out tile (double-buffered)
                + 4 * tile)           # c, carry, matmul result, slack

    nb = max(1, _cdiv(B, int(batch_tile)))
    if B > 8:
        nb = max(nb, 2)   # >=2 grid steps so "parallel" can shard across 2 TCs (v7x)
    while True:
        TB = _round_up(_cdiv(B, nb), 8)
        if vmem_estimate(TB) <= budget or TB <= 8:
            break
        nb += 1
    Bp = nb * TB
    chunks = 2 if (not use_sten and TB >= 16 and TB % 16 == 0) else 1
    rows = TB // chunks
    # NOTE: for very large H on v7x, pass matmul_dtype=jnp.bfloat16 so the resident
    # dense weight (or use the stencil path) fits in 64 MiB VMEM.
    vmem_limit = min(budget, max(32 << 20, int(1.25 * vmem_estimate(TB))))

    # ---- pad operands (padded lanes carry zero weights/bias -> stay exactly 0) ----
    def pad2(arr, r_to, c_to):
        arr = arr.astype(f32)
        return jnp.pad(arr, ((0, r_to - arr.shape[0]), (0, c_to - arr.shape[1])))

    u0_p = pad2(initial_hidden, Bp, Hp)
    x_p = pad2(x_eff, Bp, Hp)
    bias_p = pad2(bias_s, 1, Hp)
    a_p = pad2(a_row, 1, Hp)

    if use_sten:
        S = img_s
        idx = np.arange(H)
        rr, cc = idx // S, idx % S
        masks = np.stack([cc > 0,          # gets u[i-1]  -> jnp-roll shift +1
                          cc < S - 1,      # gets u[i+1]  -> jnp-roll shift -1
                          rr > 0,          # gets u[i-S]  -> jnp-roll shift +S
                          rr < S - 1],     # gets u[i+S]  -> jnp-roll shift -S
                         axis=0).astype(np.float32)             # (4, H)
        w_host = np.asarray(jax.device_get(w.astype(f32))).reshape(1, H)
        sw = np.zeros((8, Hp), np.float32)
        sw[:4, :H] = masks * (s * w_host)
        weight_arr = jnp.asarray(sw)
        weight_shape = (8, Hp)
        shifts = tuple(int((roll_sign * d) % Hp) for d in (1, -1, S, -S))
        kernel = functools.partial(_stencil_kernel, layers=layers, scalar=s,
                                   shifts=shifts,
                                   unroll=max(1, min(layers, 4)))
        flops = Bp * Hp * (9 * layers + 8)
    else:
        wwT = s * (w.astype(f32) * hidden_weight.astype(f32)).T    # (H, H)
        weight_arr = pad2(wwT, Hp, Hp).astype(matmul_dtype)
        weight_shape = (Hp, Hp)
        kernel = functools.partial(_dense_kernel, layers=layers, scalar=s,
                                   chunks=chunks, rows=rows,
                                   unroll=max(1, min(layers, max(1, 4 // chunks))),
                                   matmul_dtype=matmul_dtype)
        flops = 2 * Bp * Hp * Hp * layers + 8 * Bp * Hp

    cost = pl.CostEstimate(
        flops=int(flops),
        transcendentals=int(Bp * Hp * layers),
        bytes_accessed=int(4 * 3 * Bp * Hp + weight_buf_bytes + 8 * Hp * 4),
    )

    def run(buffered):
        def act_spec():
            return pl.BlockSpec((TB, Hp), lambda i: (i, 0))

        def const_spec(shape):
            if buffered:
                # Constant-index operands are never re-fetched: a single buffer
                # halves the VMEM held by the resident weight (key on v7x 64 MiB).
                return pl.BlockSpec(shape, lambda i: (0, 0),
                                    pipeline_mode=pl.Buffered(1))
            return pl.BlockSpec(shape, lambda i: (0, 0))

        return pl.pallas_call(
            kernel,
            out_shape=jax.ShapeDtypeStruct((Bp, Hp), f32),
            grid_spec=pltpu.PrefetchScalarGridSpec(
                num_scalar_prefetch=0,
                grid=(nb,),
                in_specs=[act_spec(),                 # u0 tile
                          act_spec(),                 # x tile
                          const_spec(weight_shape),   # s*WwT  or  stencil weights
                          const_spec((1, Hp)),        # s*bias
                          const_spec((1, Hp))],       # s*diag(a*inputWeight)
                out_specs=act_spec(),
            ),
            compiler_params=pltpu.CompilerParams(
                dimension_semantics=("parallel",),
                vmem_limit_bytes=int(vmem_limit),
            ),
            cost_estimate=cost,
        )(u0_p, x_p, weight_arr, bias_p, a_p)

    try:
        out_p = run(buffered=True)
    except Exception:
        # pl.Buffered / pipeline_mode unsupported by this jax version -> default
        # double-buffered residents (correctness unchanged).
        out_p = run(buffered=False)

    return out_p[:B, :H]


def propagation_only_fixed_weights(X, pred, w, a, bias, scalar,
                                   hidden_weight, input_weight, layers, **kwargs):
    """Top-level forward: forward(X, pred, dtype) -> iteratedLayer_Pred(pred, X).
    (The `dtype` argument of the PyTorch forward is unused.)"""
    return range_propagation_fixed_weights(pred, X, w, a, bias, scalar,
                                           hidden_weight, input_weight, layers,
                                           **kwargs)


# ----------------------------- verification ---------------------------------

def _reference(initial_hidden, x, w, a, bias, scalar,
               hidden_weight, input_weight, layers):
    """Pure-JAX transcription of the PyTorch forward (full f32 precision)."""
    hi = lax.Precision.HIGHEST
    u = initial_hidden
    u_fix = jnp.where(initial_hidden == -1.0, 0.0, initial_hidden)
    ww = w * hidden_weight            # (H, H)
    ain = a * input_weight            # (H, H)
    for _ in range(layers):
        v = (u_fix
             + jnp.matmul(u, ww.T, precision=hi)
             + bias.reshape(1, -1)
             + jnp.matmul(x, ain.T, precision=hi))
        u = jnp.tanh(v * scalar[0])
    return u


def _generate_fixed_weight_mask_pred_prey(image_size):
    """Reconstruction of generateFixedWeightMask_PredPrey (source not provided):
    4-neighbourhood adjacency on an image_size x image_size grid, identity
    diagonal mask, and edge / corner row masks consistent with
    w = 1/degree (interior 0.25, edge 0.34, corner 0.5)."""
    # TODO(synk): exact generateFixedWeightMask_PredPrey not given; this mirrors
    # its evident intent (it only affects fixed parameter construction).
    n = image_size * image_size
    idx = jnp.arange(n)
    r = idx // image_size
    c = idx % image_size
    rr_i, rr_j = jnp.meshgrid(r, r, indexing="ij")
    cc_i, cc_j = jnp.meshgrid(c, c, indexing="ij")
    manhattan = jnp.abs(rr_i - rr_j) + jnp.abs(cc_i - cc_j)
    weight_mask = manhattan == 1                      # 4-neighbourhood, no self
    diag_mask = jnp.eye(n, dtype=bool)
    on_edge_r = (r == 0) | (r == image_size - 1)
    on_edge_c = (c == 0) | (c == image_size - 1)
    corner_mask = on_edge_r & on_edge_c
    edge_mask = (on_edge_r | on_edge_c) & ~corner_mask
    return weight_mask, diag_mask, edge_mask, corner_mask


if __name__ == "__main__":
    IMAGE_SIZE = 8
    H = IMAGE_SIZE * IMAGE_SIZE       # num_pixels == hidden == D_input
    B = 4
    LAYERS = 4

    weight_mask, diag_mask, edge_mask, corner_mask = \
        _generate_fixed_weight_mask_pred_prey(IMAGE_SIZE)

    # Fixed parameters exactly as in RangePropgation_FixedWeights.__init__.
    hidden_weight = weight_mask.astype(jnp.float32)
    input_weight = diag_mask.astype(jnp.float32)
    bias = jnp.full((H, 1), -0.15, jnp.float32)
    scalar = jnp.full((1,), 20.0, jnp.float32)
    w = jnp.full((H, 1), 0.25, jnp.float32)
    w = jnp.where(edge_mask[:, None], 0.34, w)
    w = jnp.where(corner_mask[:, None], 0.5, w)
    a = jnp.ones((H, 1), jnp.float32)

    key = jax.random.PRNGKey(0)
    k_u, k_neg, k_x = jax.random.split(key, 3)
    base = jax.random.uniform(k_u, (B, H), jnp.float32, minval=-0.8, maxval=0.8)
    neg = jax.random.bernoulli(k_neg, 0.4, (B, H))
    pred = jnp.where(neg, -1.0, base)             # initial hidden with -1 sentinels
    X = jax.random.normal(k_x, (B, H), jnp.float32)

    ref = _reference(pred, X, w, a, bias, scalar,
                     hidden_weight, input_weight, LAYERS)

    # 1) auto path (4-neighbour stencil: no (H,H) weight, no MXU matmul).
    out_auto = propagation_only_fixed_weights(X, pred, w, a, bias, scalar,
                                              hidden_weight, input_weight, LAYERS)
    out_auto = jax.block_until_ready(out_auto)
    assert out_auto.shape == (B, H)
    # scalar=20 makes tanh near-step; f32 summation-order differences get amplified
    # across the layer recurrence, hence a modest tolerance.
    assert jnp.allclose(out_auto, ref, atol=1e-2, rtol=1e-2), \
        f"stencil max err {jnp.max(jnp.abs(out_auto - ref))}"

    # 2) dense (general-mask) path, f32 MXU matmul.
    out_dense = propagation_only_fixed_weights(X, pred, w, a, bias, scalar,
                                               hidden_weight, input_weight, LAYERS,
                                               use_stencil=False)
    out_dense = jax.block_until_ready(out_dense)
    assert jnp.allclose(out_dense, ref, atol=2e-3, rtol=2e-3), \
        f"dense max err {jnp.max(jnp.abs(out_dense - ref))}"

    # 3) larger batch (rows tiled -> identical per-row answer) exercising >=2 grid
    #    steps and the 2-chunk MXU/EUP overlap in the dense kernel.
    R = 16
    predL, XL, refL = (jnp.tile(t, (R, 1)) for t in (pred, X, ref))
    out_big = propagation_only_fixed_weights(XL, predL, w, a, bias, scalar,
                                             hidden_weight, input_weight, LAYERS,
                                             use_stencil=False)
    out_big = jax.block_until_ready(out_big)
    assert out_big.shape == (B * R, H)
    assert jnp.allclose(out_big, refL, atol=2e-3, rtol=2e-3), \
        f"chunked dense max err {jnp.max(jnp.abs(out_big - refL))}"

    # 4) bf16 MXU operands (perf option for large H; steep tanh means only a
    #    sanity check is meaningful here -- see review correctness concerns).
    out_bf16 = propagation_only_fixed_weights(XL, predL, w, a, bias, scalar,
                                              hidden_weight, input_weight, LAYERS,
                                              use_stencil=False,
                                              matmul_dtype=jnp.bfloat16)
    out_bf16 = jax.block_until_ready(out_bf16)
    assert out_bf16.shape == (B * R, H)
    assert bool(jnp.all(jnp.isfinite(out_bf16)))
    assert float(jnp.max(jnp.abs(out_bf16))) <= 1.0 + 1e-5

    print("KERNEL_OK")
</pallas_src>

<mosaic_0001>
module attributes {stable_mosaic.version = 11 : i64} {
  func.func @probe(%arg0: memref<8x128xf32, #tpu.memory_space<vmem>>, %arg1: memref<8x128xf32, #tpu.memory_space<vmem>>) attributes {dimension_semantics = [], scalar_prefetch = 0 : i64, scratch_operands = 0 : i64, tpu.core_type = #tpu.core_type<tc>} {
    %c0 = arith.constant 0 : index
    %c0_0 = arith.constant 0 : index
    %0 = vector.load %arg0[%c0, %c0_0] : memref<8x128xf32, #tpu.memory_space<vmem>>, vector<8x128xf32>
    %c1_i32 = arith.constant 1 : i32
    %1 = tpu.dynamic_rotate %0 by %c1_i32 dim 1 : vector<8x128xf32>, i32 -> vector<8x128xf32>
    %c0_1 = arith.constant 0 : index
    %c0_2 = arith.constant 0 : index
    %2 = vector.load %arg1[%c0_1, %c0_2] : memref<8x128xf32, #tpu.memory_space<vmem>>, vector<8x128xf32>
    tpu.vector_store %arg1[%c0_1, %c0_2], %1 {strides = array<i32>} : memref<8x128xf32, #tpu.memory_space<vmem>>, vector<8x128xf32>,
    return
  }
}

module attributes {stable_mosaic.version = 11 : i64} {
  func.func @_dense_kernel(%arg0: i32, %arg1: memref<8x128xf32, #tpu.memory_space<vmem>>, %arg2: memref<8x128xf32, #tpu.memory_space<vmem>>, %arg3: memref<128x128xf32, #tpu.memory_space<vmem>>, %arg4: memref<1x128xf32, #tpu.memory_space<vmem>>, %arg5: memref<1x128xf32, #tpu.memory_space<vmem>>, %arg6: memref<8x128xf32, #tpu.memory_space<vmem>>) attributes {dimension_semantics = [#tpu.dimension_semantics<parallel>], iteration_bounds = array<i64: 1>, scalar_prefetch = 0 : i64, scratch_operands = 0 : i64, tpu.core_type = #tpu.core_type<tc>, window_params = [{transform_indices = @transform_0, window_bounds = array<i64: 8, 128>}, {transform_indices = @transform_1, window_bounds = array<i64: 8, 128>}, {pipeline_mode = #tpu.pipeline_mode<synchronous>, transform_indices = @transform_2, window_bounds = array<i64: 128, 128>}, {pipeline_mode = #tpu.pipeline_mode<synchronous>, transform_indices = @transform_3, window_bounds = array<i64: 1, 128>}, {pipeline_mode = #tpu.pipeline_mode<synchronous>, transform_indices = @transform_4, window_bounds = array<i64: 1, 128>}, {transform_indices = @transform_5, window_bounds = array<i64: 8, 128>}]} {
    %c0 = arith.constant 0 : index
    %c0_0 = arith.constant 0 : index
    %0 = vector.load %arg3[%c0, %c0_0] : memref<128x128xf32, #tpu.memory_space<vmem>>, vector<128x128xf32>
    %c0_1 = arith.constant 0 : index
    %c0_2 = arith.constant 0 : index
    %1 = vector.load %arg4[%c0_1, %c0_2] : memref<1x128xf32, #tpu.memory_space<vmem>>, vector<1x128xf32>
    %c0_3 = arith.constant 0 : index
    %c0_4 = arith.constant 0 : index
    %2 = vector.load %arg5[%c0_3, %c0_4] : memref<1x128xf32, #tpu.memory_space<vmem>>, vector<1x128xf32>
    %c0_5 = arith.constant 0 : index
    %c0_6 = arith.constant 0 : index
    %3 = vector.load %arg1[%c0_5, %c0_6] : memref<8x128xf32, #tpu.memory_space<vmem>>, vector<8x128xf32>
    %c0_7 = arith.constant 0 : index
    %c0_8 = arith.constant 0 : index
    %4 = vector.load %arg2[%c0_7, %c0_8] : memref<8x128xf32, #tpu.memory_space<vmem>>, vector<8x128xf32>
    %cst = arith.constant -1.000000e+00 : f32
    %5 = vector.broadcast %cst : f32 to vector<8x128xf32>
    %6 = arith.cmpf oeq, %3, %5 : vector<8x128xf32>
    %cst_9 = arith.constant 0.000000e+00 : f32
    %7 = vector.broadcast %cst_9 : f32 to vector<8x128xf32>
    %8 = arith.select %6, %7, %3 : vector<8x128xi1>, vector<8x128xf32>
    %cst_10 = arith.constant 2.000000e+01 : f32
    %9 = vector.broadcast %cst_10 : f32 to vector<8x128xf32>
    %10 = arith.mulf %8, %9 : vector<8x128xf32>
    %11 = vector.broadcast %1 : vector<1x128xf32> to vector<8x128xf32>
    %12 = arith.addf %10, %11 : vector<8x128xf32>
    %13 = vector.broadcast %2 : vector<1x128xf32> to vector<8x128xf32>
    %14 = arith.mulf %4, %13 : vector<8x128xf32>
    %15 = arith.addf %12, %14 : vector<8x128xf32>
    %c0_i32 = arith.constant 0 : i32
    %cst_11 = arith.constant dense<0.000000e+00> : vector<8x128xf32>
    %16 = tpu.matmul %3, %0, %cst_11 {dimension_numbers = #tpu.dot_dimension_numbers<[1], [0], [0], [1], [0, 0, 1, 1], [], []>} : vector<8x128xf32>, vector<128x128xf32>, vector<8x128xf32> -> vector<8x128xf32>
    %17 = arith.addf %15, %16 : vector<8x128xf32>
    %18 = math.tanh %17 : vector<8x128xf32>
    %c1_i32 = arith.constant 1 : i32
    %cst_12 = arith.constant dense<0.000000e+00> : vector<8x128xf32>
    %19 = tpu.matmul %18, %0, %cst_12 {dimension_numbers = #tpu.dot_dimension_numbers<[1], [0], [0], [1], [0, 0, 1, 1], [], []>} : vector<8x128xf32>, vector<128x128xf32>, vector<8x128xf32> -> vector<8x128xf32>
    %20 = arith.addf %15, %19 : vector<8x128xf32>
    %21 = math.tanh %20 : vector<8x128xf32>
    %c2_i32 = arith.constant 2 : i32
    %cst_13 = arith.constant dense<0.000000e+00> : vector<8x128xf32>
    %22 = tpu.matmul %21, %0, %cst_13 {dimension_numbers = #tpu.dot_dimension_numbers<[1], [0], [0], [1], [0, 0, 1, 1], [], []>} : vector<8x128xf32>, vector<128x128xf32>, vector<8x128xf32> -> vector<8x128xf32>
    %23 = arith.addf %15, %22 : vector<8x128xf32>
    %24 = math.tanh %23 : vector<8x128xf32>
    %c3_i32 = arith.constant 3 : i32
    %cst_14 = arith.constant dense<0.000000e+00> : vector<8x128xf32>
    %25 = tpu.matmul %24, %0, %cst_14 {dimension_numbers = #tpu.dot_dimension_numbers<[1], [0], [0], [1], [0, 0, 1, 1], [], []>} : vector<8x128xf32>, vector<128x128xf32>, vector<8x128xf32> -> vector<8x128xf32>
    %26 = arith.addf %15, %25 : vector<8x128xf32>
    %27 = math.tanh %26 : vector<8x128xf32>
    %c0_15 = arith.constant 0 : index
    %c0_16 = arith.constant 0 : index
    %28 = vector.load %arg6[%c0_15, %c0_16] : memref<8x128xf32, #tpu.memory_space<vmem>>, vector<8x128xf32>
    tpu.vector_store %arg6[%c0_15, %c0_16], %27 {strides = array<i32>} : memref<8x128xf32, #tpu.memory_space<vmem>>, vector<8x128xf32>,
    return
  }
  func.func @transform_0(%arg0: i32) -> (i32, i32) {
    %c0_i32 = arith.constant 0 : i32
    %c0_i32_0 = arith.constant 0 : i32
    return %arg0, %c0_i32 : i32, i32
  }
  func.func @transform_1(%arg0: i32) -> (i32, i32) {
    %c0_i32 = arith.constant 0 : i32
    %c0_i32_0 = arith.constant 0 : i32
    return %arg0, %c0_i32 : i32, i32
  }
  func.func @transform_2(%arg0: i32) -> (i32, i32) {
    %c0_i32 = arith.constant 0 : i32
    %c0_i32_0 = arith.constant 0 : i32
    %c0_i32_1 = arith.constant 0 : i32
    return %c0_i32, %c0_i32_0 : i32, i32
  }
  func.func @transform_3(%arg0: i32) -> (i32, i32) {
    %c0_i32 = arith.constant 0 : i32
    %c0_i32_0 = arith.constant 0 : i32
    %c0_i32_1 = arith.constant 0 : i32
    return %c0_i32, %c0_i32_0 : i32, i32
  }
  func.func @transform_4(%arg0: i32) -> (i32, i32) {
    %c0_i32 = arith.constant 0 : i32
    %c0_i32_0 = arith.constant 0 : i32
    %c0_i32_1 = arith.constant 0 : i32
    return %c0_i32, %c0_i32_0 : i32, i32
  }
  func.func @transform_5(%arg0: i32) -> (i32, i32) {
    %c0_i32 = arith.constant 0 : i32
    %c0_i32_0 = arith.constant 0 : i32
    return %arg0, %c0_i32 : i32, i32
  }
}

module attributes {stable_mosaic.version = 11 : i64} {
  func.func @_dense_kernel(%arg0: i32, %arg1: memref<8x128xf32, #tpu.memory_space<vmem>>, %arg2: memref<8x128xf32, #tpu.memory_space<vmem>>, %arg3: memref<128x128xf32, #tpu.memory_space<vmem>>, %arg4: memref<1x128xf32, #tpu.memory_space<vmem>>, %arg5: memref<1x128xf32, #tpu.memory_space<vmem>>, %arg6: memref<8x128xf32, #tpu.memory_space<vmem>>) attributes {dimension_semantics = [#tpu.dimension_semantics<parallel>], iteration_bounds = array<i64: 1>, scalar_prefetch = 0 : i64, scratch_operands = 0 : i64, tpu.core_type = #tpu.core_type<tc>, window_params = [{transform_indices = @transform_0, window_bounds = array<i64: 8, 128>}, {transform_indices = @transform_1, window_bounds = array<i64: 8, 128>}, {pipeline_mode = #tpu.pipeline_mode<synchronous>, transform_indices = @transform_2, window_bounds = array<i64: 128, 128>}, {pipeline_mode = #tpu.pipeline_mode<synchronous>, transform_indices = @transform_3, window_bounds = array<i64: 1, 128>}, {pipeline_mode = #tpu.pipeline_mode<synchronous>, transform_indices = @transform_4, window_bounds = array<i64: 1, 128>}, {transform_indices = @transform_5, window_bounds = array<i64: 8, 128>}]} {
    %c0 = arith.constant 0 : index
    %c0_0 = arith.constant 0 : index
    %0 = vector.load %arg3[%c0, %c0_0] : memref<128x128xf32, #tpu.memory_space<vmem>>, vector<128x128xf32>
    %c0_1 = arith.constant 0 : index
    %c0_2 = arith.constant 0 : index
    %1 = vector.load %arg4[%c0_1, %c0_2] : memref<1x128xf32, #tpu.memory_space<vmem>>, vector<1x128xf32>
    %c0_3 = arith.constant 0 : index
    %c0_4 = arith.constant 0 : index
    %2 = vector.load %arg5[%c0_3, %c0_4] : memref<1x128xf32, #tpu.memory_space<vmem>>, vector<1x128xf32>
    %c0_5 = arith.constant 0 : index
    %c0_6 = arith.constant 0 : index
    %3 = vector.load %arg1[%c0_5, %c0_6] : memref<8x128xf32, #tpu.memory_space<vmem>>, vector<8x128xf32>
    %c0_7 = arith.constant 0 : index
    %c0_8 = arith.constant 0 : index
    %4 = vector.load %arg2[%c0_7, %c0_8] : memref<8x128xf32, #tpu.memory_space<vmem>>, vector<8x128xf32>
    %cst = arith.constant -1.000000e+00 : f32
    %5 = vector.broadcast %cst : f32 to vector<8x128xf32>
    %6 = arith.cmpf oeq, %3, %5 : vector<8x128xf32>
    %cst_9 = arith.constant 0.000000e+00 : f32
    %7 = vector.broadcast %cst_9 : f32 to vector<8x128xf32>
    %8 = arith.select %6, %7, %3 : vector<8x128xi1>, vector<8x128xf32>
    %cst_10 = arith.constant 2.000000e+01 : f32
    %9 = vector.broadcast %cst_10 : f32 to vector<8x128xf32>
    %10 = arith.mulf %8, %9 : vector<8x128xf32>
    %11 = vector.broadcast %1 : vector<1x128xf32> to vector<8x128xf32>
    %12 = arith.addf %10, %11 : vector<8x128xf32>
    %13 = vector.broadcast %2 : vector<1x128xf32> to vector<8x128xf32>
    %14 = arith.mulf %4, %13 : vector<8x128xf32>
    %15 = arith.addf %12, %14 : vector<8x128xf32>
    %c0_i32 = arith.constant 0 : i32
    %cst_11 = arith.constant dense<0.000000e+00> : vector<8x128xf32>
    %16 = tpu.matmul %3, %0, %cst_11 {dimension_numbers = #tpu.dot_dimension_numbers<[1], [0], [0], [1], [0, 0, 1, 1], [], []>} : vector<8x128xf32>, vector<128x128xf32>, vector<8x128xf32> -> vector<8x128xf32>
    %17 = arith.addf %15, %16 : vector<8x128xf32>
    %18 = math.tanh %17 : vector<8x128xf32>
    %c1_i32 = arith.constant 1 : i32
    %cst_12 = arith.constant dense<0.000000e+00> : vector<8x128xf32>
    %19 = tpu.matmul %18, %0, %cst_12 {dimension_numbers = #tpu.dot_dimension_numbers<[1], [0], [0], [1], [0, 0, 1, 1], [], []>} : vector<8x128xf32>, vector<128x128xf32>, vector<8x128xf32> -> vector<8x128xf32>
    %20 = arith.addf %15, %19 : vector<8x128xf32>
    %21 = math.tanh %20 : vector<8x128xf32>
    %c2_i32 = arith.constant 2 : i32
    %cst_13 = arith.constant dense<0.000000e+00> : vector<8x128xf32>
    %22 = tpu.matmul %21, %0, %cst_13 {dimension_numbers = #tpu.dot_dimension_numbers<[1], [0], [0], [1], [0, 0, 1, 1], [], []>} : vector<8x128xf32>, vector<128x128xf32>, vector<8x128xf32> -> vector<8x128xf32>
    %23 = arith.addf %15, %22 : vector<8x128xf32>
    %24 = math.tanh %23 : vector<8x128xf32>
    %c3_i32 = arith.constant 3 : i32
    %cst_14 = arith.constant dense<0.000000e+00> : vector<8x128xf32>
    %25 = tpu.matmul %24, %0, %cst_14 {dimension_numbers = #tpu.dot_dimension_numbers<[1], [0], [0], [1], [0, 0, 1, 1], [], []>} : vector<8x128xf32>, vector<128x128xf32>, vector<8x128xf32> -> vector<8x128xf32>
    %26 = arith.addf %15, %25 : vector<8x128xf32>
    %27 = math.tanh %26 : vector<8x128xf32>
    %c0_15 = arith.constant 0 : index
    %c0_16 = arith.constant 0 : index
    %28 = vector.load %arg6[%c0_15, %c0_16] : memref<8x128xf32, #tpu.memory_space<vmem>>, vector<8x128xf32>
    tpu.vector_store %arg6[%c0_15, %c0_16], %27 {strides = array<i32>} : memref<8x128xf32, #tpu.memory_space<vmem>>, vector<8x128xf32>,
    return
  }
  func.func @transform_0(%arg0: i32) -> (i32, i32) {
    %c0_i32 = arith.constant 0 : i32
    %c0_i32_0 = arith.constant 0 : i32
    return %arg0, %c0_i32 : i32, i32
  }
  func.func @transform_1(%arg0: i32) -> (i32, i32) {
    %c0_i32 = arith.constant 0 : i32
    %c0_i32_0 = arith.constant 0 : i32
    return %arg0, %c0_i32 : i32, i32
  }
  func.func @transform_2(%arg0: i32) -> (i32, i32) {
    %c0_i32 = arith.constant 0 : i32
    %c0_i32_0 = arith.constant 0 : i32
    %c0_i32_1 = arith.constant 0 : i32
    return %c0_i32, %c0_i32_0 : i32, i32
  }
  func.func @transform_3(%arg0: i32) -> (i32, i32) {
    %c0_i32 = arith.constant 0 : i32
    %c0_i32_0 = arith.constant 0 : i32
    %c0_i32_1 = arith.constant 0 : i32
    return %c0_i32, %c0_i32_0 : i32, i32
  }
  func.func @transform_4(%arg0: i32) -> (i32, i32) {
    %c0_i32 = arith.constant 0 : i32
    %c0_i32_0 = arith.constant 0 : i32
    %c0_i32_1 = arith.constant 0 : i32
    return %c0_i32, %c0_i32_0 : i32, i32
  }
  func.func @transform_5(%arg0: i32) -> (i32, i32) {
    %c0_i32 = arith.constant 0 : i32
    %c0_i32_0 = arith.constant 0 : i32
    return %arg0, %c0_i32 : i32, i32
  }
}

</mosaic_0001>

<llo_original>
// kernel: tpu_custom_call.1
$region0: #{tpu_custom_call.1}
  #allocation0 [shape = 'u32[]', space=smem, size = 0x4, offset = 0x4, fixed_abs, tag = 'smem constant byte address 0x4 - core index']
  #allocation1 [shape = 'u32[144,128]{1,0:T(1,128)}', space=vmem, size = 0x12000, scoped, tag = 'internal scratch']
  %s0 = inlined_call_operand.hbm [shape: f32[8,128], index: 0, kind: input, shape index: {}]
  %s1 = inlined_call_operand.hbm [shape: f32[8,128], index: 1, kind: output, shape index: {}]
  %s2 = sld [smem:[#allocation0]]
  $region18: #{tpu_custom_call.1} parent=0
    _
  %s4 = ssub.s32 1, %s2
  %s5 = scalar_select 0, %s4, %s2
  $region1: #{tpu_custom_call.1} parent=0
    #allocation2 [shape = 'u8[4096]{0}', space=vmem, size = 0x1000, scoped, tag = 'input window, operand 0, single buffered']
    #allocation3 [shape = 's32[1]{0}', space=sflag, size = 0x4, scoped, tag = 'scoped memory for tpu_custom_call.1']
    #allocation4 [shape = 's32[1]{0}', space=sflag, size = 0x4, scoped, tag = 'scoped memory for tpu_custom_call.1']
    #allocation5 [shape = 'u8[4096]{0}', space=vmem, size = 0x1000, scoped, tag = 'output window, operand 0, single buffered']
    %6 = vsyncpa [#allocation3], 0
    %7 = vsyncpa [#allocation4], 0
    // Predicated region
    $region2: #{tpu_custom_call.1} parent=1 // pred_check
      _
    $region3: #{tpu_custom_call.1} parent=1 // pred_check_branch
      %9 = sbr.rel (0) target = $region5
    $region4: #{tpu_custom_call.1} parent=1 // pred_region
      %s11 = ssub.s32 128, 128
      %12 = vsyncadd [#allocation3], %s11
      %s14 = sshll.u32 [#allocation2], 4
      %s15 = int_to_ptr.vmem [resolvable:$true] %s14
      %17 = dma.hbm_to_vmem [thread:$0]  %s0, 128, %s15, [#allocation3]
    $region5: #{tpu_custom_call.1} parent=1 // pred_fallthru
      _
    // Predicated region
    $region6: #{tpu_custom_call.1} parent=1 // pred_check
      _
    $region7: #{tpu_custom_call.1} parent=1 // pred_check_branch
      %19 = sbr.rel (0) target = $region9
    $region8: #{tpu_custom_call.1} parent=1 // pred_region
      %20 = dma.done [#allocation3], 128
    $region9: #{tpu_custom_call.1} parent=1 // pred_fallthru
      _
    %v21 = vld [vmem:[#allocation2] sm:$0xff]
    %22 = vrot.lane.b32.xlu0 %v21, 1
    %v23 = vpop.permute.xlu0 %22
    %24 = vst [vmem:[#allocation5] sm:$0xff] %v23
    // Predicated region
    $region10: #{tpu_custom_call.1} parent=1 // pred_check
      _
    $region11: #{tpu_custom_call.1} parent=1 // pred_check_branch
      %26 = sbr.rel (0) target = $region13
    $region12: #{tpu_custom_call.1} parent=1 // pred_region
      %s28 = ssub.s32 128, 128
      %29 = vsyncadd [#allocation4], %s28
      %s31 = sshll.u32 [#allocation5], 4
      %s32 = int_to_ptr.vmem [resolvable:$true] %s31
      %34 = dma.vmem_to_hbm [thread:$0]  %s32, 128, %s1, [#allocation4]
    $region13: #{tpu_custom_call.1} parent=1 // pred_fallthru
      _
    // Predicated region
    $region14: #{tpu_custom_call.1} parent=1 // pred_check
      _
    $region15: #{tpu_custom_call.1} parent=1 // pred_check_branch
      %36 = sbr.rel (0) target = $region17
    $region16: #{tpu_custom_call.1} parent=1 // pred_region
      %37 = dma.done [#allocation4], 128
    $region17: #{tpu_custom_call.1} parent=1 // pred_fallthru
      _
    %38 = vsyncpa [#allocation3], 1
    %39 = vsyncpa [#allocation4], 1

// kernel: tpu_custom_call.1
$region0: #{tpu_custom_call.1}
  #allocation0 [shape = 'u32[]', space=smem, size = 0x4, offset = 0x4, fixed_abs, tag = 'smem constant byte address 0x4 - core index']
  #allocation1 [shape = 'u32[144,128]{1,0:T(1,128)}', space=vmem, size = 0x12000, scoped, tag = 'internal scratch']
  %s0 = inlined_call_operand.hbm [shape: f32[8,128], index: 0, kind: input, shape index: {}]
  %s1 = inlined_call_operand.hbm [shape: f32[8,128], index: 1, kind: input, shape index: {}]
  %s2 = inlined_call_operand.hbm [shape: f32[128,128], index: 2, kind: input, shape index: {}]
  %s3 = inlined_call_operand.vmem [shape: f32[1,128], index: 3, kind: input, shape index: {}]
  %s4 = inlined_call_operand.vmem [shape: f32[1,128], index: 4, kind: input, shape index: {}]
  %s5 = inlined_call_operand.hbm [shape: f32[8,128], index: 5, kind: output, shape index: {}]
  %s6 = sld [smem:[#allocation0]]
  $region42: #{tpu_custom_call.1} parent=0
    _
  %s8 = ssub.s32 1, %s6
  %s9 = scalar_select 0, %s8, %s6
  $region1: #{tpu_custom_call.1} parent=0
    #allocation2 [shape = 'u8[4096]{0}', space=vmem, size = 0x1000, scoped, tag = 'input window, operand 0, single buffered']
    #allocation3 [shape = 's32[1]{0}', space=sflag, size = 0x4, scoped, tag = 'scoped memory for tpu_custom_call.1']
    #allocation4 [shape = 's32[1]{0}', space=sflag, size = 0x4, scoped, tag = 'scoped memory for tpu_custom_call.1']
    #allocation5 [shape = 'u8[4096]{0}', space=vmem, size = 0x1000, scoped, tag = 'input window, operand 1, single buffered']
    #allocation6 [shape = 's32[1]{0}', space=sflag, size = 0x4, scoped, tag = 'scoped memory for tpu_custom_call.1']
    #allocation7 [shape = 'u8[65536]{0}', space=vmem, size = 0x10000, scoped, tag = 'input window, operand 2, single buffered']
    #allocation8 [shape = 'u8[4096]{0}', space=vmem, size = 0x1000, scoped, tag = 'output window, operand 0, single buffered']
    %10 = vsyncpa [#allocation3], 0
    %11 = vsyncpa [#allocation6], 0
    %12 = vsyncpa [#allocation4], 0
    // Predicated region
    $region2: #{tpu_custom_call.1} parent=1 // pred_check
      _
    $region3: #{tpu_custom_call.1} parent=1 // pred_check_branch
      %14 = sbr.rel (0) target = $region5
    $region4: #{tpu_custom_call.1} parent=1 // pred_region
      %s16 = ssub.s32 128, 128
      %17 = vsyncadd [#allocation3], %s16
      %s19 = sshll.u32 [#allocation2], 4
      %s20 = int_to_ptr.vmem [resolvable:$true] %s19
      %22 = dma.hbm_to_vmem [thread:$0]  %s0, 128, %s20, [#allocation3]
    $region5: #{tpu_custom_call.1} parent=1 // pred_fallthru
      _
    // Predicated region
    $region6: #{tpu_custom_call.1} parent=1 // pred_check
      _
    $region7: #{tpu_custom_call.1} parent=1 // pred_check_branch
      %24 = sbr.rel (0) target = $region9
    $region8: #{tpu_custom_call.1} parent=1 // pred_region
      %s26 = ssub.s32 128, 128
      %27 = vsyncadd [#allocation6], %s26
      %s29 = sshll.u32 [#allocation5], 4
      %s30 = int_to_ptr.vmem [resolvable:$true] %s29
      %32 = dma.hbm_to_vmem [thread:$0]  %s1, 128, %s30, [#allocation6]
    $region9: #{tpu_custom_call.1} parent=1 // pred_fallthru
      _
    // Predicated region
    $region10: #{tpu_custom_call.1} parent=1 // pred_check
      _
    $region11: #{tpu_custom_call.1} parent=1 // pred_check_branch
      %34 = sbr.rel (0) target = $region13
    $region12: #{tpu_custom_call.1} parent=1 // pred_region
      %s36 = ssub.s32 2048, 2048
      %37 = vsyncadd [#allocation6], %s36
      %s38 = sshll.u32 [#allocation7], 4
      %s39 = int_to_ptr.vmem [resolvable:$true] %s38
      %44 = dma.hbm_to_vmem [thread:$0]  %s2, 2048, %s39, [#allocation6], 128, 128, 8
    $region13: #{tpu_custom_call.1} parent=1 // pred_fallthru
      _
    // Predicated region
    $region14: #{tpu_custom_call.1} parent=1 // pred_check
      _
    $region15: #{tpu_custom_call.1} parent=1 // pred_check_branch
      %46 = sbr.rel (0) target = $region17
    $region16: #{tpu_custom_call.1} parent=1 // pred_region
      _
    $region17: #{tpu_custom_call.1} parent=1 // pred_fallthru
      _
    // Predicated region
    $region18: #{tpu_custom_call.1} parent=1 // pred_check
      _
    $region19: #{tpu_custom_call.1} parent=1 // pred_check_branch
      %48 = sbr.rel (0) target = $region21
    $region20: #{tpu_custom_call.1} parent=1 // pred_region
      _
    $region21: #{tpu_custom_call.1} parent=1 // pred_fallthru
      _
    // Predicated region
    $region22: #{tpu_custom_call.1} parent=1 // pred_check
      _
    $region23: #{tpu_custom_call.1} parent=1 // pred_check_branch
      %50 = sbr.rel (0) target = $region25
    $region24: #{tpu_custom_call.1} parent=1 // pred_region
      %51 = dma.done [#allocation3], 128
    $region25: #{tpu_custom_call.1} parent=1 // pred_fallthru
      _
    // Predicated region
    $region26: #{tpu_custom_call.1} parent=1 // pred_check
      _
    $region27: #{tpu_custom_call.1} parent=1 // pred_check_branch
      %53 = sbr.rel (0) target = $region29
    $region28: #{tpu_custom_call.1} parent=1 // pred_region
      %54 = dma.done [#allocation6], 128
    $region29: #{tpu_custom_call.1} parent=1 // pred_fallthru
      _
    // Predicated region
    $region30: #{tpu_custom_call.1} parent=1 // pred_check
      _
    $region31: #{tpu_custom_call.1} parent=1 // pred_check_branch
      %56 = sbr.rel (0) target = $region33
    $region32: #{tpu_custom_call.1} parent=1 // pred_region
      %57 = dma.done [#allocation6], 2048
    $region33: #{tpu_custom_call.1} parent=1 // pred_fallthru
      _
    %v58 = vld [vmem:[#allocation7] sm:$0xff]
    %v59 = vld [vmem:[#allocation7 + $0x8] sm:$0xff]
    %v60 = vld [vmem:[#allocation7 + $0x10] sm:$0xff]
    %v61 = vld [vmem:[#allocation7 + $0x18] sm:$0xff]
    %v62 = vld [vmem:[#allocation7 + $0x20] sm:$0xff]
    %v63 = vld [vmem:[#allocation7 + $0x28] sm:$0xff]
    %v64 = vld [vmem:[#allocation7 + $0x30] sm:$0xff]
    %v65 = vld [vmem:[#allocation7 + $0x38] sm:$0xff]
    %v66 = vld [vmem:[#allocation7 + $0x40] sm:$0xff]
    %v67 = vld [vmem:[#allocation7 + $0x48] sm:$0xff]
    %v68 = vld [vmem:[#allocation7 + $0x50] sm:$0xff]
    %v69 = vld [vmem:[#allocation7 + $0x58] sm:$0xff]
    %v70 = vld [vmem:[#allocation7 + $0x60] sm:$0xff]
    %v71 = vld [vmem:[#allocation7 + $0x68] sm:$0xff]
    %v72 = vld [vmem:[#allocation7 + $0x70] sm:$0xff]
    %v73 = vld [vmem:[#allocation7 + $0x78] sm:$0xff]
    %v74 = vld [vmem:[%s3] sm:$0x1]
    %v75 = vld [vmem:[%s4] sm:$0x1]
    %v76 = vld [vmem:[#allocation2] sm:$0xff]
    %v77 = vld [vmem:[#allocation5] sm:$0xff]
    %vm78 = vcmp.eq.f32.partialorder %v76, -1.0
    %v79 = vsel %vm78, 0.0, %v76
    %v80 = vmul.f32 %v79, 20.0
    %v82 = vlaneseq
    %v83 = vshrl.u32 %v82, 7
    %v84 = vsub.s32 0, %v83
    %v85 = vrot.slane %v74, %v84
    %v87 = vadd.f32 %v80, %v85
    %v89 = vlaneseq
    %v90 = vshrl.u32 %v89, 7
    %v91 = vsub.s32 0, %v90
    %v92 = vrot.slane %v75, %v91
    %v94 = vmul.f32 %v77, %v92
    %v95 = vadd.f32 %v87, %v94
    %96 = vmatprep.subr.mxu0 0.0
    %97 = vmatpush1.msra.mxu0 %v58
    %98 = vmatprep.subr.mxu0 0.0
    %99 = vmatpush1.msra.mxu0 %v59
    %100 = vmatprep.subr.mxu0 0.0
    %101 = vmatpush1.msra.mxu0 %v60
    %102 = vmatprep.subr.mxu0 0.0
    %103 = vmatpush1.msra.mxu0 %v61
    %104 = vmatprep.subr.mxu0 0.0
    %105 = vmatpush1.msra.mxu0 %v62
    %106 = vmatprep.subr.mxu0 0.0
    %107 = vmatpush1.msra.mxu0 %v63
    %108 = vmatprep.subr.mxu0 0.0
    %109 = vmatpush1.msra.mxu0 %v64
    %110 = vmatprep.subr.mxu0 0.0
    %111 = vmatpush1.msra.mxu0 %v65
    %112 = vmatprep.subr.mxu0 0.0
    %113 = vmatpush1.msra.mxu0 %v66
    %114 = vmatprep.subr.mxu0 0.0
    %115 = vmatpush1.msra.mxu0 %v67
    %116 = vmatprep.subr.mxu0 0.0
    %117 = vmatpush1.msra.mxu0 %v68
    %118 = vmatprep.subr.mxu0 0.0
    %119 = vmatpush1.msra.mxu0 %v69
    %120 = vmatprep.subr.mxu0 0.0
    %121 = vmatpush1.msra.mxu0 %v70
    %122 = vmatprep.subr.mxu0 0.0
    %123 = vmatpush1.msra.mxu0 %v71
    %124 = vmatprep.subr.mxu0 0.0
    %125 = vmatpush1.msra.mxu0 %v72
    %126 = vmatprep.subr.mxu0 0.0
    %127 = vmatpush1.msra.mxu0 %v73
    %128 = vmatprep.subr.mxu0 0.0
    %129 = vmatpush1.msra.mxu0 0.0
    %130 = vmatprep.subr.mxu0 0.0
    %131 = vmatpush1.msra.mxu0 0.0
    %132 = vmatprep.subr.mxu0 0.0
    %133 = vmatpush1.msra.mxu0 0.0
    %134 = vmatprep.subr.mxu0 0.0
    %135 = vmatpush1.msra.mxu0 0.0
    %136 = vmatprep.subr.mxu0 0.0
    %137 = vmatpush1.msra.mxu0 0.0
    %138 = vmatprep.subr.mxu0 0.0
    %139 = vmatpush1.msra.mxu0 0.0
    %140 = vmatprep.subr.mxu0 0.0
    %141 = vmatpush1.msra.mxu0 0.0
    %142 = vmatprep.subr.mxu0 0.0
    %143 = vmatpush1.msra.mxu0 0.0
    %144 = vmatprep.subr.mxu0 0.0
    %145 = vmatpush1.msra.mxu0 0.0
    %146 = vmatprep.subr.mxu0 0.0
    %147 = vmatpush1.msra.mxu0 0.0
    %148 = vmatprep.subr.mxu0 0.0
    %149 = vmatpush1.msra.mxu0 0.0
    %150 = vmatprep.subr.mxu0 0.0
    %151 = vmatpush1.msra.mxu0 0.0
    %152 = vmatprep.subr.mxu0 0.0
    %153 = vmatpush1.msra.mxu0 0.0
    %154 = vmatprep.subr.mxu0 0.0
    %155 = vmatpush1.msra.mxu0 0.0
    %156 = vmatprep.subr.mxu0 0.0
    %157 = vmatpush1.msra.mxu0 0.0
    %158 = vmatprep.subr.mxu0 0.0
    %159 = vmatpush1.msra.mxu0 0.0
    %160 = vmatprep.mubr.f32.mxu0 0.0
    %161 = vmatmul.mubr.f32.gmra.mrb[0].mxu0 %v76
    %v162 = vpop.f32.mrb[0].mxu0
    %v163 = vadd.f32 0.0, %v162
    %v164 = vpop.f32.mrb[0].mxu0
    %165 = vdwg.mxu0
    %v166 = vadd.f32 %v95, %v163
    %v167 = vtanh.pop %v166
    %168 = vmatprep.subr.mxu0 0.0
    %169 = vmatpush1.msra.mxu0 %v58
    %170 = vmatprep.subr.mxu0 0.0
    %171 = vmatpush1.msra.mxu0 %v59
    %172 = vmatprep.subr.mxu0 0.0
    %173 = vmatpush1.msra.mxu0 %v60
    %174 = vmatprep.subr.mxu0 0.0
    %175 = vmatpush1.msra.mxu0 %v61
    %176 = vmatprep.subr.mxu0 0.0
    %177 = vmatpush1.msra.mxu0 %v62
    %178 = vmatprep.subr.mxu0 0.0
    %179 = vmatpush1.msra.mxu0 %v63
    %180 = vmatprep.subr.mxu0 0.0
    %181 = vmatpush1.msra.mxu0 %v64
    %182 = vmatprep.subr.mxu0 0.0
    %183 = vmatpush1.msra.mxu0 %v65
    %184 = vmatprep.subr.mxu0 0.0
    %185 = vmatpush1.msra.mxu0 %v66
    %186 = vmatprep.subr.mxu0 0.0
    %187 = vmatpush1.msra.mxu0 %v67
    %188 = vmatprep.subr.mxu0 0.0
    %189 = vmatpush1.msra.mxu0 %v68
    %190 = vmatprep.subr.mxu0 0.0
    %191 = vmatpush1.msra.mxu0 %v69
    %192 = vmatprep.subr.mxu0 0.0
    %193 = vmatpush1.msra.mxu0 %v70
    %194 = vmatprep.subr.mxu0 0.0
    %195 = vmatpush1.msra.mxu0 %v71
    %196 = vmatprep.subr.mxu0 0.0
    %197 = vmatpush1.msra.mxu0 %v72
    %198 = vmatprep.subr.mxu0 0.0
    %199 = vmatpush1.msra.mxu0 %v73
    %200 = vmatprep.subr.mxu0 0.0
    %201 = vmatpush1.msra.mxu0 0.0
    %202 = vmatprep.subr.mxu0 0.0
    %203 = vmatpush1.msra.mxu0 0.0
    %204 = vmatprep.subr.mxu0 0.0
    %205 = vmatpush1.msra.mxu0 0.0
    %206 = vmatprep.subr.mxu0 0.0
    %207 = vmatpush1.msra.mxu0 0.0
    %208 = vmatprep.subr.mxu0 0.0
    %209 = vmatpush1.msra.mxu0 0.0
    %210 = vmatprep.subr.mxu0 0.0
    %211 = vmatpush1.msra.mxu0 0.0
    %212 = vmatprep.subr.mxu0 0.0
    %213 = vmatpush1.msra.mxu0 0.0
    %214 = vmatprep.subr.mxu0 0.0
    %215 = vmatpush1.msra.mxu0 0.0
    %216 = vmatprep.subr.mxu0 0.0
    %217 = vmatpush1.msra.mxu0 0.0
    %218 = vmatprep.subr.mxu0 0.0
    %219 = vmatpush1.msra.mxu0 0.0
    %220 = vmatprep.subr.mxu0 0.0
    %221 = vmatpush1.msra.mxu0 0.0
    %222 = vmatprep.subr.mxu0 0.0
    %223 = vmatpush1.msra.mxu0 0.0
    %224 = vmatprep.subr.mxu0 0.0
    %225 = vmatpush1.msra.mxu0 0.0
    %226 = vmatprep.subr.mxu0 0.0
    %227 = vmatpush1.msra.mxu0 0.0
    %228 = vmatprep.subr.mxu0 0.0
    %229 = vmatpush1.msra.mxu0 0.0
    %230 = vmatprep.subr.mxu0 0.0
    %231 = vmatpush1.msra.mxu0 0.0
    %232 = vmatprep.mubr.f32.mxu0 0.0
    %233 = vmatmul.mubr.f32.gmra.mrb[0].mxu0 %v167
    %v234 = vpop.f32.mrb[0].mxu0
    %v235 = vadd.f32 0.0, %v234
    %v236 = vpop.f32.mrb[0].mxu0
    %237 = vdwg.mxu0
    %v238 = vadd.f32 %v95, %v235
    %v239 = vtanh.pop %v238
    %240 = vmatprep.subr.mxu0 0.0
    %241 = vmatpush1.msra.mxu0 %v58
    %242 = vmatprep.subr.mxu0 0.0
    %243 = vmatpush1.msra.mxu0 %v59
    %244 = vmatprep.subr.mxu0 0.0
    %245 = vmatpush1.msra.mxu0 %v60
    %246 = vmatprep.subr.mxu0 0.0
    %247 = vmatpush1.msra.mxu0 %v61
    %248 = vmatprep.subr.mxu0 0.0
    %249 = vmatpush1.msra.mxu0 %v62
    %250 = vmatprep.subr.mxu0 0.0
    %251 = vmatpush1.msra.mxu0 %v63
    %252 = vmatprep.subr.mxu0 0.0
    %253 = vmatpush1.msra.mxu0 %v64
    %254 = vmatprep.subr.mxu0 0.0
    %255 = vmatpush1.msra.mxu0 %v65
    %256 = vmatprep.subr.mxu0 0.0
    %257 = vmatpush1.msra.mxu0 %v66
    %258 = vmatprep.subr.mxu0 0.0
    %259 = vmatpush1.msra.mxu0 %v67
    %260 = vmatprep.subr.mxu0 0.0
    %261 = vmatpush1.msra.mxu0 %v68
    %262 = vmatprep.subr.mxu0 0.0
    %263 = vmatpush1.msra.mxu0 %v69
    %264 = vmatprep.subr.mxu0 0.0
    %265 = vmatpush1.msra.mxu0 %v70
    %266 = vmatprep.subr.mxu0 0.0
    %267 = vmatpush1.msra.mxu0 %v71
    %268 = vmatprep.subr.mxu0 0.0
    %269 = vmatpush1.msra.mxu0 %v72
    %270 = vmatprep.subr.mxu0 0.0
    %271 = vmatpush1.msra.mxu0 %v73
    %272 = vmatprep.subr.mxu0 0.0
    %273 = vmatpush1.msra.mxu0 0.0
    %274 = vmatprep.subr.mxu0 0.0
    %275 = vmatpush1.msra.mxu0 0.0
    %276 = vmatprep.subr.mxu0 0.0
    %277 = vmatpush1.msra.mxu0 0.0
    %278 = vmatprep.subr.mxu0 0.0
    %279 = vmatpush1.msra.mxu0 0.0
    %280 = vmatprep.subr.mxu0 0.0
    %281 = vmatpush1.msra.mxu0 0.0
    %282 = vmatprep.subr.mxu0 0.0
    %283 = vmatpush1.msra.mxu0 0.0
    %284 = vmatprep.subr.mxu0 0.0
    %285 = vmatpush1.msra.mxu0 0.0
    %286 = vmatprep.subr.mxu0 0.0
    %287 = vmatpush1.msra.mxu0 0.0
    %288 = vmatprep.subr.mxu0 0.0
    %289 = vmatpush1.msra.mxu0 0.0
    %290 = vmatprep.subr.mxu0 0.0
    %291 = vmatpush1.msra.mxu0 0.0
    %292 = vmatprep.subr.mxu0 0.0
    %293 = vmatpush1.msra.mxu0 0.0
    %294 = vmatprep.subr.mxu0 0.0
    %295 = vmatpush1.msra.mxu0 0.0
    %296 = vmatprep.subr.mxu0 0.0
    %297 = vmatpush1.msra.mxu0 0.0
    %298 = vmatprep.subr.mxu0 0.0
    %299 = vmatpush1.msra.mxu0 0.0
    %300 = vmatprep.subr.mxu0 0.0
    %301 = vmatpush1.msra.mxu0 0.0
    %302 = vmatprep.subr.mxu0 0.0
    %303 = vmatpush1.msra.mxu0 0.0
    %304 = vmatprep.mubr.f32.mxu0 0.0
    %305 = vmatmul.mubr.f32.gmra.mrb[0].mxu0 %v239
    %v306 = vpop.f32.mrb[0].mxu0
    %v307 = vadd.f32 0.0, %v306
    %v308 = vpop.f32.mrb[0].mxu0
    %309 = vdwg.mxu0
    %v310 = vadd.f32 %v95, %v307
    %v311 = vtanh.pop %v310
    %312 = vmatprep.subr.mxu0 0.0
    %313 = vmatpush1.msra.mxu0 %v58
    %314 = vmatprep.subr.mxu0 0.0
    %315 = vmatpush1.msra.mxu0 %v59
    %316 = vmatprep.subr.mxu0 0.0
    %317 = vmatpush1.msra.mxu0 %v60
    %318 = vmatprep.subr.mxu0 0.0
    %319 = vmatpush1.msra.mxu0 %v61
    %320 = vmatprep.subr.mxu0 0.0
    %321 = vmatpush1.msra.mxu0 %v62
    %322 = vmatprep.subr.mxu0 0.0
    %323 = vmatpush1.msra.mxu0 %v63
    %324 = vmatprep.subr.mxu0 0.0
    %325 = vmatpush1.msra.mxu0 %v64
    %326 = vmatprep.subr.mxu0 0.0
    %327 = vmatpush1.msra.mxu0 %v65
    %328 = vmatprep.subr.mxu0 0.0
    %329 = vmatpush1.msra.mxu0 %v66
    %330 = vmatprep.subr.mxu0 0.0
    %331 = vmatpush1.msra.mxu0 %v67
    %332 = vmatprep.subr.mxu0 0.0
    %333 = vmatpush1.msra.mxu0 %v68
    %334 = vmatprep.subr.mxu0 0.0
    %335 = vmatpush1.msra.mxu0 %v69
    %336 = vmatprep.subr.mxu0 0.0
    %337 = vmatpush1.msra.mxu0 %v70
    %338 = vmatprep.subr.mxu0 0.0
    %339 = vmatpush1.msra.mxu0 %v71
    %340 = vmatprep.subr.mxu0 0.0
    %341 = vmatpush1.msra.mxu0 %v72
    %342 = vmatprep.subr.mxu0 0.0
    %343 = vmatpush1.msra.mxu0 %v73
    %344 = vmatprep.subr.mxu0 0.0
    %345 = vmatpush1.msra.mxu0 0.0
    %346 = vmatprep.subr.mxu0 0.0
    %347 = vmatpush1.msra.mxu0 0.0
    %348 = vmatprep.subr.mxu0 0.0
    %349 = vmatpush1.msra.mxu0 0.0
    %350 = vmatprep.subr.mxu0 0.0
    %351 = vmatpush1.msra.mxu0 0.0
    %352 = vmatprep.subr.mxu0 0.0
    %353 = vmatpush1.msra.mxu0 0.0
    %354 = vmatprep.subr.mxu0 0.0
    %355 = vmatpush1.msra.mxu0 0.0
    %356 = vmatprep.subr.mxu0 0.0
    %357 = vmatpush1.msra.mxu0 0.0
    %358 = vmatprep.subr.mxu0 0.0
    %359 = vmatpush1.msra.mxu0 0.0
    %360 = vmatprep.subr.mxu0 0.0
    %361 = vmatpush1.msra.mxu0 0.0
    %362 = vmatprep.subr.mxu0 0.0
    %363 = vmatpush1.msra.mxu0 0.0
    %364 = vmatprep.subr.mxu0 0.0
    %365 = vmatpush1.msra.mxu0 0.0
    %366 = vmatprep.subr.mxu0 0.0
    %367 = vmatpush1.msra.mxu0 0.0
    %368 = vmatprep.subr.mxu0 0.0
    %369 = vmatpush1.msra.mxu0 0.0
    %370 = vmatprep.subr.mxu0 0.0
    %371 = vmatpush1.msra.mxu0 0.0
    %372 = vmatprep.subr.mxu0 0.0
    %373 = vmatpush1.msra.mxu0 0.0
    %374 = vmatprep.subr.mxu0 0.0
    %375 = vmatpush1.msra.mxu0 0.0
    %376 = vmatprep.mubr.f32.mxu0 0.0
    %377 = vmatmul.mubr.f32.gmra.mrb[0].mxu0 %v311
    %v378 = vpop.f32.mrb[0].mxu0
    %v379 = vadd.f32 0.0, %v378
    %v380 = vpop.f32.mrb[0].mxu0
    %381 = vdwg.mxu0
    %v382 = vadd.f32 %v95, %v379
    %v383 = vtanh.pop %v382
    %384 = vst [vmem:[#allocation8] sm:$0xff] %v383
    // Predicated region
    $region34: #{tpu_custom_call.1} parent=1 // pred_check
      _
    $region35: #{tpu_custom_call.1} parent=1 // pred_check_branch
      %386 = sbr.rel (0) target = $region37
    $region36: #{tpu_custom_call.1} parent=1 // pred_region
      %s388 = ssub.s32 128, 128
      %389 = vsyncadd [#allocation4], %s388
      %s391 = sshll.u32 [#allocation8], 4
      %s392 = int_to_ptr.vmem [resolvable:$true] %s391
      %394 = dma.vmem_to_hbm [thread:$0]  %s392, 128, %s5, [#allocation4]
    $region37: #{tpu_custom_call.1} parent=1 // pred_fallthru
      _
    // Predicated region
    $region38: #{tpu_custom_call.1} parent=1 // pred_check
      _
    $region39: #{tpu_custom_call.1} parent=1 // pred_check_branch
      %396 = sbr.rel (0) target = $region41
    $region40: #{tpu_custom_call.1} parent=1 // pred_region
      %397 = dma.done [#allocation4], 128
    $region41: #{tpu_custom_call.1} parent=1 // pred_fallthru
      _
    %398 = vsyncpa [#allocation3], 1
    %399 = vsyncpa [#allocation6], 1
    %400 = vsyncpa [#allocation4], 1

// kernel: tpu_custom_call.1
$region0: #{tpu_custom_call.1}
  #allocation0 [shape = 'u32[]', space=smem, size = 0x4, offset = 0x4, fixed_abs, tag = 'smem constant byte address 0x4 - core index']
  #allocation1 [shape = 'u32[144,128]{1,0:T(1,128)}', space=vmem, size = 0x12000, scoped, tag = 'internal scratch']
  %s0 = inlined_call_operand.hbm [shape: f32[8,128], index: 0, kind: input, shape index: {}]
  %s1 = inlined_call_operand.hbm [shape: f32[8,128], index: 1, kind: input, shape index: {}]
  %s2 = inlined_call_operand.hbm [shape: f32[128,128], index: 2, kind: input, shape index: {}]
  %s3 = inlined_call_operand.vmem [shape: f32[1,128], index: 3, kind: input, shape index: {}]
  %s4 = inlined_call_operand.vmem [shape: f32[1,128], index: 4, kind: input, shape index: {}]
  %s5 = inlined_call_operand.hbm [shape: f32[8,128], index: 5, kind: output, shape index: {}]
  %s6 = sld [smem:[#allocation0]]
  $region42: #{tpu_custom_call.1} parent=0
    _
  %s8 = ssub.s32 1, %s6
  %s9 = scalar_select 0, %s8, %s6
  $region1: #{tpu_custom_call.1} parent=0
    #allocation2 [shape = 'u8[4096]{0}', space=vmem, size = 0x1000, scoped, tag = 'input window, operand 0, single buffered']
    #allocation3 [shape = 's32[1]{0}', space=sflag, size = 0x4, scoped, tag = 'scoped memory for tpu_custom_call.1']
    #allocation4 [shape = 's32[1]{0}', space=sflag, size = 0x4, scoped, tag = 'scoped memory for tpu_custom_call.1']
    #allocation5 [shape = 'u8[4096]{0}', space=vmem, size = 0x1000, scoped, tag = 'input window, operand 1, single buffered']
    #allocation6 [shape = 's32[1]{0}', space=sflag, size = 0x4, scoped, tag = 'scoped memory for tpu_custom_call.1']
    #allocation7 [shape = 'u8[65536]{0}', space=vmem, size = 0x10000, scoped, tag = 'input window, operand 2, single buffered']
    #allocation8 [shape = 'u8[4096]{0}', space=vmem, size = 0x1000, scoped, tag = 'output window, operand 0, single buffered']
    %10 = vsyncpa [#allocation3], 0
    %11 = vsyncpa [#allocation6], 0
    %12 = vsyncpa [#allocation4], 0
    // Predicated region
    $region2: #{tpu_custom_call.1} parent=1 // pred_check
      _
    $region3: #{tpu_custom_call.1} parent=1 // pred_check_branch
      %14 = sbr.rel (0) target = $region5
    $region4: #{tpu_custom_call.1} parent=1 // pred_region
      %s16 = ssub.s32 128, 128
      %17 = vsyncadd [#allocation3], %s16
      %s19 = sshll.u32 [#allocation2], 4
      %s20 = int_to_ptr.vmem [resolvable:$true] %s19
      %22 = dma.hbm_to_vmem [thread:$0]  %s0, 128, %s20, [#allocation3]
    $region5: #{tpu_custom_call.1} parent=1 // pred_fallthru
      _
    // Predicated region
    $region6: #{tpu_custom_call.1} parent=1 // pred_check
      _
    $region7: #{tpu_custom_call.1} parent=1 // pred_check_branch
      %24 = sbr.rel (0) target = $region9
    $region8: #{tpu_custom_call.1} parent=1 // pred_region
      %s26 = ssub.s32 128, 128
      %27 = vsyncadd [#allocation6], %s26
      %s29 = sshll.u32 [#allocation5], 4
      %s30 = int_to_ptr.vmem [resolvable:$true] %s29
      %32 = dma.hbm_to_vmem [thread:$0]  %s1, 128, %s30, [#allocation6]
    $region9: #{tpu_custom_call.1} parent=1 // pred_fallthru
      _
    // Predicated region
    $region10: #{tpu_custom_call.1} parent=1 // pred_check
      _
    $region11: #{tpu_custom_call.1} parent=1 // pred_check_branch
      %34 = sbr.rel (0) target = $region13
    $region12: #{tpu_custom_call.1} parent=1 // pred_region
      %s36 = ssub.s32 2048, 2048
      %37 = vsyncadd [#allocation6], %s36
      %s38 = sshll.u32 [#allocation7], 4
      %s39 = int_to_ptr.vmem [resolvable:$true] %s38
      %44 = dma.hbm_to_vmem [thread:$0]  %s2, 2048, %s39, [#allocation6], 128, 128, 8
    $region13: #{tpu_custom_call.1} parent=1 // pred_fallthru
      _
    // Predicated region
    $region14: #{tpu_custom_call.1} parent=1 // pred_check
      _
    $region15: #{tpu_custom_call.1} parent=1 // pred_check_branch
      %46 = sbr.rel (0) target = $region17
    $region16: #{tpu_custom_call.1} parent=1 // pred_region
      _
    $region17: #{tpu_custom_call.1} parent=1 // pred_fallthru
      _
    // Predicated region
    $region18: #{tpu_custom_call.1} parent=1 // pred_check
      _
    $region19: #{tpu_custom_call.1} parent=1 // pred_check_branch
      %48 = sbr.rel (0) target = $region21
    $region20: #{tpu_custom_call.1} parent=1 // pred_region
      _
    $region21: #{tpu_custom_call.1} parent=1 // pred_fallthru
      _
    // Predicated region
    $region22: #{tpu_custom_call.1} parent=1 // pred_check
      _
    $region23: #{tpu_custom_call.1} parent=1 // pred_check_branch
      %50 = sbr.rel (0) target = $region25
    $region24: #{tpu_custom_call.1} parent=1 // pred_region
      %51 = dma.done [#allocation3], 128
    $region25: #{tpu_custom_call.1} parent=1 // pred_fallthru
      _
    // Predicated region
    $region26: #{tpu_custom_call.1} parent=1 // pred_check
      _
    $region27: #{tpu_custom_call.1} parent=1 // pred_check_branch
      %53 = sbr.rel (0) target = $region29
    $region28: #{tpu_custom_call.1} parent=1 // pred_region
      %54 = dma.done [#allocation6], 128
    $region29: #{tpu_custom_call.1} parent=1 // pred_fallthru
      _
    // Predicated region
    $region30: #{tpu_custom_call.1} parent=1 // pred_check
      _
    $region31: #{tpu_custom_call.1} parent=1 // pred_check_branch
      %56 = sbr.rel (0) target = $region33
    $region32: #{tpu_custom_call.1} parent=1 // pred_region
      %57 = dma.done [#allocation6], 2048
    $region33: #{tpu_custom_call.1} parent=1 // pred_fallthru
      _
    %v58 = vld [vmem:[#allocation7] sm:$0xff]
    %v59 = vld [vmem:[#allocation7 + $0x8] sm:$0xff]
    %v60 = vld [vmem:[#allocation7 + $0x10] sm:$0xff]
    %v61 = vld [vmem:[#allocation7 + $0x18] sm:$0xff]
    %v62 = vld [vmem:[#allocation7 + $0x20] sm:$0xff]
    %v63 = vld [vmem:[#allocation7 + $0x28] sm:$0xff]
    %v64 = vld [vmem:[#allocation7 + $0x30] sm:$0xff]
    %v65 = vld [vmem:[#allocation7 + $0x38] sm:$0xff]
    %v66 = vld [vmem:[#allocation7 + $0x40] sm:$0xff]
    %v67 = vld [vmem:[#allocation7 + $0x48] sm:$0xff]
    %v68 = vld [vmem:[#allocation7 + $0x50] sm:$0xff]
    %v69 = vld [vmem:[#allocation7 + $0x58] sm:$0xff]
    %v70 = vld [vmem:[#allocation7 + $0x60] sm:$0xff]
    %v71 = vld [vmem:[#allocation7 + $0x68] sm:$0xff]
    %v72 = vld [vmem:[#allocation7 + $0x70] sm:$0xff]
    %v73 = vld [vmem:[#allocation7 + $0x78] sm:$0xff]
    %v74 = vld [vmem:[%s3] sm:$0x1]
    %v75 = vld [vmem:[%s4] sm:$0x1]
    %v76 = vld [vmem:[#allocation2] sm:$0xff]
    %v77 = vld [vmem:[#allocation5] sm:$0xff]
    %vm78 = vcmp.eq.f32.partialorder %v76, -1.0
    %v79 = vsel %vm78, 0.0, %v76
    %v80 = vmul.f32 %v79, 20.0
    %v82 = vlaneseq
    %v83 = vshrl.u32 %v82, 7
    %v84 = vsub.s32 0, %v83
    %v85 = vrot.slane %v74, %v84
    %v87 = vadd.f32 %v80, %v85
    %v89 = vlaneseq
    %v90 = vshrl.u32 %v89, 7
    %v91 = vsub.s32 0, %v90
    %v92 = vrot.slane %v75, %v91
    %v94 = vmul.f32 %v77, %v92
    %v95 = vadd.f32 %v87, %v94
    %96 = vmatprep.subr.mxu0 0.0
    %97 = vmatpush1.msra.mxu0 %v58
    %98 = vmatprep.subr.mxu0 0.0
    %99 = vmatpush1.msra.mxu0 %v59
    %100 = vmatprep.subr.mxu0 0.0
    %101 = vmatpush1.msra.mxu0 %v60
    %102 = vmatprep.subr.mxu0 0.0
    %103 = vmatpush1.msra.mxu0 %v61
    %104 = vmatprep.subr.mxu0 0.0
    %105 = vmatpush1.msra.mxu0 %v62
    %106 = vmatprep.subr.mxu0 0.0
    %107 = vmatpush1.msra.mxu0 %v63
    %108 = vmatprep.subr.mxu0 0.0
    %109 = vmatpush1.msra.mxu0 %v64
    %110 = vmatprep.subr.mxu0 0.0
    %111 = vmatpush1.msra.mxu0 %v65
    %112 = vmatprep.subr.mxu0 0.0
    %113 = vmatpush1.msra.mxu0 %v66
    %114 = vmatprep.subr.mxu0 0.0
    %115 = vmatpush1.msra.mxu0 %v67
    %116 = vmatprep.subr.mxu0 0.0
    %117 = vmatpush1.msra.mxu0 %v68
    %118 = vmatprep.subr.mxu0 0.0
    %119 = vmatpush1.msra.mxu0 %v69
    %120 = vmatprep.subr.mxu0 0.0
    %121 = vmatpush1.msra.mxu0 %v70
    %122 = vmatprep.subr.mxu0 0.0
    %123 = vmatpush1.msra.mxu0 %v71
    %124 = vmatprep.subr.mxu0 0.0
    %125 = vmatpush1.msra.mxu0 %v72
    %126 = vmatprep.subr.mxu0 0.0
    %127 = vmatpush1.msra.mxu0 %v73
    %128 = vmatprep.subr.mxu0 0.0
    %129 = vmatpush1.msra.mxu0 0.0
    %130 = vmatprep.subr.mxu0 0.0
    %131 = vmatpush1.msra.mxu0 0.0
    %132 = vmatprep.subr.mxu0 0.0
    %133 = vmatpush1.msra.mxu0 0.0
    %134 = vmatprep.subr.mxu0 0.0
    %135 = vmatpush1.msra.mxu0 0.0
    %136 = vmatprep.subr.mxu0 0.0
    %137 = vmatpush1.msra.mxu0 0.0
    %138 = vmatprep.subr.mxu0 0.0
    %139 = vmatpush1.msra.mxu0 0.0
    %140 = vmatprep.subr.mxu0 0.0
    %141 = vmatpush1.msra.mxu0 0.0
    %142 = vmatprep.subr.mxu0 0.0
    %143 = vmatpush1.msra.mxu0 0.0
    %144 = vmatprep.subr.mxu0 0.0
    %145 = vmatpush1.msra.mxu0 0.0
    %146 = vmatprep.subr.mxu0 0.0
    %147 = vmatpush1.msra.mxu0 0.0
    %148 = vmatprep.subr.mxu0 0.0
    %149 = vmatpush1.msra.mxu0 0.0
    %150 = vmatprep.subr.mxu0 0.0
    %151 = vmatpush1.msra.mxu0 0.0
    %152 = vmatprep.subr.mxu0 0.0
    %153 = vmatpush1.msra.mxu0 0.0
    %154 = vmatprep.subr.mxu0 0.0
    %155 = vmatpush1.msra.mxu0 0.0
    %156 = vmatprep.subr.mxu0 0.0
    %157 = vmatpush1.msra.mxu0 0.0
    %158 = vmatprep.subr.mxu0 0.0
    %159 = vmatpush1.msra.mxu0 0.0
    %160 = vmatprep.mubr.f32.mxu0 0.0
    %161 = vmatmul.mubr.f32.gmra.mrb[0].mxu0 %v76
    %v162 = vpop.f32.mrb[0].mxu0
    %v163 = vadd.f32 0.0, %v162
    %v164 = vpop.f32.mrb[0].mxu0
    %165 = vdwg.mxu0
    %v166 = vadd.f32 %v95, %v163
    %v167 = vtanh.pop %v166
    %168 = vmatprep.subr.mxu0 0.0
    %169 = vmatpush1.msra.mxu0 %v58
    %170 = vmatprep.subr.mxu0 0.0
    %171 = vmatpush1.msra.mxu0 %v59
    %172 = vmatprep.subr.mxu0 0.0
    %173 = vmatpush1.msra.mxu0 %v60
    %174 = vmatprep.subr.mxu0 0.0
    %175 = vmatpush1.msra.mxu0 %v61
    %176 = vmatprep.subr.mxu0 0.0
    %177 = vmatpush1.msra.mxu0 %v62
    %178 = vmatprep.subr.mxu0 0.0
    %179 = vmatpush1.msra.mxu0 %v63
    %180 = vmatprep.subr.mxu0 0.0
    %181 = vmatpush1.msra.mxu0 %v64
    %182 = vmatprep.subr.mxu0 0.0
    %183 = vmatpush1.msra.mxu0 %v65
    %184 = vmatprep.subr.mxu0 0.0
    %185 = vmatpush1.msra.mxu0 %v66
    %186 = vmatprep.subr.mxu0 0.0
    %187 = vmatpush1.msra.mxu0 %v67
    %188 = vmatprep.subr.mxu0 0.0
    %189 = vmatpush1.msra.mxu0 %v68
    %190 = vmatprep.subr.mxu0 0.0
    %191 = vmatpush1.msra.mxu0 %v69
    %192 = vmatprep.subr.mxu0 0.0
    %193 = vmatpush1.msra.mxu0 %v70
    %194 = vmatprep.subr.mxu0 0.0
    %195 = vmatpush1.msra.mxu0 %v71
    %196 = vmatprep.subr.mxu0 0.0
    %197 = vmatpush1.msra.mxu0 %v72
    %198 = vmatprep.subr.mxu0 0.0
    %199 = vmatpush1.msra.mxu0 %v73
    %200 = vmatprep.subr.mxu0 0.0
    %201 = vmatpush1.msra.mxu0 0.0
    %202 = vmatprep.subr.mxu0 0.0
    %203 = vmatpush1.msra.mxu0 0.0
    %204 = vmatprep.subr.mxu0 0.0
    %205 = vmatpush1.msra.mxu0 0.0
    %206 = vmatprep.subr.mxu0 0.0
    %207 = vmatpush1.msra.mxu0 0.0
    %208 = vmatprep.subr.mxu0 0.0
    %209 = vmatpush1.msra.mxu0 0.0
    %210 = vmatprep.subr.mxu0 0.0
    %211 = vmatpush1.msra.mxu0 0.0
    %212 = vmatprep.subr.mxu0 0.0
    %213 = vmatpush1.msra.mxu0 0.0
    %214 = vmatprep.subr.mxu0 0.0
    %215 = vmatpush1.msra.mxu0 0.0
    %216 = vmatprep.subr.mxu0 0.0
    %217 = vmatpush1.msra.mxu0 0.0
    %218 = vmatprep.subr.mxu0 0.0
    %219 = vmatpush1.msra.mxu0 0.0
    %220 = vmatprep.subr.mxu0 0.0
    %221 = vmatpush1.msra.mxu0 0.0
    %222 = vmatprep.subr.mxu0 0.0
    %223 = vmatpush1.msra.mxu0 0.0
    %224 = vmatprep.subr.mxu0 0.0
    %225 = vmatpush1.msra.mxu0 0.0
    %226 = vmatprep.subr.mxu0 0.0
    %227 = vmatpush1.msra.mxu0 0.0
    %228 = vmatprep.subr.mxu0 0.0
    %229 = vmatpush1.msra.mxu0 0.0
    %230 = vmatprep.subr.mxu0 0.0
    %231 = vmatpush1.msra.mxu0 0.0
    %232 = vmatprep.mubr.f32.mxu0 0.0
    %233 = vmatmul.mubr.f32.gmra.mrb[0].mxu0 %v167
    %v234 = vpop.f32.mrb[0].mxu0
    %v235 = vadd.f32 0.0, %v234
    %v236 = vpop.f32.mrb[0].mxu0
    %237 = vdwg.mxu0
    %v238 = vadd.f32 %v95, %v235
    %v239 = vtanh.pop %v238
    %240 = vmatprep.subr.mxu0 0.0
    %241 = vmatpush1.msra.mxu0 %v58
    %242 = vmatprep.subr.mxu0 0.0
    %243 = vmatpush1.msra.mxu0 %v59
    %244 = vmatprep.subr.mxu0 0.0
    %245 = vmatpush1.msra.mxu0 %v60
    %246 = vmatprep.subr.mxu0 0.0
    %247 = vmatpush1.msra.mxu0 %v61
    %248 = vmatprep.subr.mxu0 0.0
    %249 = vmatpush1.msra.mxu0 %v62
    %250 = vmatprep.subr.mxu0 0.0
    %251 = vmatpush1.msra.mxu0 %v63
    %252 = vmatprep.subr.mxu0 0.0
    %253 = vmatpush1.msra.mxu0 %v64
    %254 = vmatprep.subr.mxu0 0.0
    %255 = vmatpush1.msra.mxu0 %v65
    %256 = vmatprep.subr.mxu0 0.0
    %257 = vmatpush1.msra.mxu0 %v66
    %258 = vmatprep.subr.mxu0 0.0
    %259 = vmatpush1.msra.mxu0 %v67
    %260 = vmatprep.subr.mxu0 0.0
    %261 = vmatpush1.msra.mxu0 %v68
    %262 = vmatprep.subr.mxu0 0.0
    %263 = vmatpush1.msra.mxu0 %v69
    %264 = vmatprep.subr.mxu0 0.0
    %265 = vmatpush1.msra.mxu0 %v70
    %266 = vmatprep.subr.mxu0 0.0
    %267 = vmatpush1.msra.mxu0 %v71
    %268 = vmatprep.subr.mxu0 0.0
    %269 = vmatpush1.msra.mxu0 %v72
    %270 = vmatprep.subr.mxu0 0.0
    %271 = vmatpush1.msra.mxu0 %v73
    %272 = vmatprep.subr.mxu0 0.0
    %273 = vmatpush1.msra.mxu0 0.0
    %274 = vmatprep.subr.mxu0 0.0
    %275 = vmatpush1.msra.mxu0 0.0
    %276 = vmatprep.subr.mxu0 0.0
    %277 = vmatpush1.msra.mxu0 0.0
    %278 = vmatprep.subr.mxu0 0.0
    %279 = vmatpush1.msra.mxu0 0.0
    %280 = vmatprep.subr.mxu0 0.0
    %281 = vmatpush1.msra.mxu0 0.0
    %282 = vmatprep.subr.mxu0 0.0
    %283 = vmatpush1.msra.mxu0 0.0
    %284 = vmatprep.subr.mxu0 0.0
    %285 = vmatpush1.msra.mxu0 0.0
    %286 = vmatprep.subr.mxu0 0.0
    %287 = vmatpush1.msra.mxu0 0.0
    %288 = vmatprep.subr.mxu0 0.0
    %289 = vmatpush1.msra.mxu0 0.0
    %290 = vmatprep.subr.mxu0 0.0
    %291 = vmatpush1.msra.mxu0 0.0
    %292 = vmatprep.subr.mxu0 0.0
    %293 = vmatpush1.msra.mxu0 0.0
    %294 = vmatprep.subr.mxu0 0.0
    %295 = vmatpush1.msra.mxu0 0.0
    %296 = vmatprep.subr.mxu0 0.0
    %297 = vmatpush1.msra.mxu0 0.0
    %298 = vmatprep.subr.mxu0 0.0
    %299 = vmatpush1.msra.mxu0 0.0
    %300 = vmatprep.subr.mxu0 0.0
    %301 = vmatpush1.msra.mxu0 0.0
    %302 = vmatprep.subr.mxu0 0.0
    %303 = vmatpush1.msra.mxu0 0.0
    %304 = vmatprep.mubr.f32.mxu0 0.0
    %305 = vmatmul.mubr.f32.gmra.mrb[0].mxu0 %v239
    %v306 = vpop.f32.mrb[0].mxu0
    %v307 = vadd.f32 0.0, %v306
    %v308 = vpop.f32.mrb[0].mxu0
    %309 = vdwg.mxu0
    %v310 = vadd.f32 %v95, %v307
    %v311 = vtanh.pop %v310
    %312 = vmatprep.subr.mxu0 0.0
    %313 = vmatpush1.msra.mxu0 %v58
    %314 = vmatprep.subr.mxu0 0.0
    %315 = vmatpush1.msra.mxu0 %v59
    %316 = vmatprep.subr.mxu0 0.0
    %317 = vmatpush1.msra.mxu0 %v60
    %318 = vmatprep.subr.mxu0 0.0
    %319 = vmatpush1.msra.mxu0 %v61
    %320 = vmatprep.subr.mxu0 0.0
    %321 = vmatpush1.msra.mxu0 %v62
    %322 = vmatprep.subr.mxu0 0.0
    %323 = vmatpush1.msra.mxu0 %v63
    %324 = vmatprep.subr.mxu0 0.0
    %325 = vmatpush1.msra.mxu0 %v64
    %326 = vmatprep.subr.mxu0 0.0
    %327 = vmatpush1.msra.mxu0 %v65
    %328 = vmatprep.subr.mxu0 0.0
    %329 = vmatpush1.msra.mxu0 %v66
    %330 = vmatprep.subr.mxu0 0.0
    %331 = vmatpush1.msra.mxu0 %v67
    %332 = vmatprep.subr.mxu0 0.0
    %333 = vmatpush1.msra.mxu0 %v68
    %334 = vmatprep.subr.mxu0 0.0
    %335 = vmatpush1.msra.mxu0 %v69
    %336 = vmatprep.subr.mxu0 0.0
    %337 = vmatpush1.msra.mxu0 %v70
    %338 = vmatprep.subr.mxu0 0.0
    %339 = vmatpush1.msra.mxu0 %v71
    %340 = vmatprep.subr.mxu0 0.0
    %341 = vmatpush1.msra.mxu0 %v72
    %342 = vmatprep.subr.mxu0 0.0
    %343 = vmatpush1.msra.mxu0 %v73
    %344 = vmatprep.subr.mxu0 0.0
    %345 = vmatpush1.msra.mxu0 0.0
    %346 = vmatprep.subr.mxu0 0.0
    %347 = vmatpush1.msra.mxu0 0.0
    %348 = vmatprep.subr.mxu0 0.0
    %349 = vmatpush1.msra.mxu0 0.0
    %350 = vmatprep.subr.mxu0 0.0
    %351 = vmatpush1.msra.mxu0 0.0
    %352 = vmatprep.subr.mxu0 0.0
    %353 = vmatpush1.msra.mxu0 0.0
    %354 = vmatprep.subr.mxu0 0.0
    %355 = vmatpush1.msra.mxu0 0.0
    %356 = vmatprep.subr.mxu0 0.0
    %357 = vmatpush1.msra.mxu0 0.0
    %358 = vmatprep.subr.mxu0 0.0
    %359 = vmatpush1.msra.mxu0 0.0
    %360 = vmatprep.subr.mxu0 0.0
    %361 = vmatpush1.msra.mxu0 0.0
    %362 = vmatprep.subr.mxu0 0.0
    %363 = vmatpush1.msra.mxu0 0.0
    %364 = vmatprep.subr.mxu0 0.0
    %365 = vmatpush1.msra.mxu0 0.0
    %366 = vmatprep.subr.mxu0 0.0
    %367 = vmatpush1.msra.mxu0 0.0
    %368 = vmatprep.subr.mxu0 0.0
    %369 = vmatpush1.msra.mxu0 0.0
    %370 = vmatprep.subr.mxu0 0.0
    %371 = vmatpush1.msra.mxu0 0.0
    %372 = vmatprep.subr.mxu0 0.0
    %373 = vmatpush1.msra.mxu0 0.0
    %374 = vmatprep.subr.mxu0 0.0
    %375 = vmatpush1.msra.mxu0 0.0
    %376 = vmatprep.mubr.f32.mxu0 0.0
    %377 = vmatmul.mubr.f32.gmra.mrb[0].mxu0 %v311
    %v378 = vpop.f32.mrb[0].mxu0
    %v379 = vadd.f32 0.0, %v378
    %v380 = vpop.f32.mrb[0].mxu0
    %381 = vdwg.mxu0
    %v382 = vadd.f32 %v95, %v379
    %v383 = vtanh.pop %v382
    %384 = vst [vmem:[#allocation8] sm:$0xff] %v383
    // Predicated region
    $region34: #{tpu_custom_call.1} parent=1 // pred_check
      _
    $region35: #{tpu_custom_call.1} parent=1 // pred_check_branch
      %386 = sbr.rel (0) target = $region37
    $region36: #{tpu_custom_call.1} parent=1 // pred_region
      %s388 = ssub.s32 128, 128
      %389 = vsyncadd [#allocation4], %s388
      %s391 = sshll.u32 [#allocation8], 4
      %s392 = int_to_ptr.vmem [resolvable:$true] %s391
      %394 = dma.vmem_to_hbm [thread:$0]  %s392, 128, %s5, [#allocation4]
    $region37: #{tpu_custom_call.1} parent=1 // pred_fallthru
      _
    // Predicated region
    $region38: #{tpu_custom_call.1} parent=1 // pred_check
      _
    $region39: #{tpu_custom_call.1} parent=1 // pred_check_branch
      %396 = sbr.rel (0) target = $region41
    $region40: #{tpu_custom_call.1} parent=1 // pred_region
      %397 = dma.done [#allocation4], 128
    $region41: #{tpu_custom_call.1} parent=1 // pred_fallthru
      _
    %398 = vsyncpa [#allocation3], 1
    %399 = vsyncpa [#allocation6], 1
    %400 = vsyncpa [#allocation4], 1

</llo_original>
